<compile_context>
chip_gen: v7x
topology: tpu7x:2x2x1
jax: 0.10.0
libtpu: 0.0.40
codegen_flags: <defaults>
</compile_context>

<pallas_src>
import functools

import jax
import jax.numpy as jnp
from jax.experimental import pallas as pl
from jax.experimental.pallas import tpu as pltpu


def _round_up(x, m):
    return ((x + m - 1) // m) * m


def _device_tile_defaults():
    """Per-generation (token_tile, i_tile, vmem_budget_bytes) defaults.

    Arithmetic intensity of one (tile, expert) step is ~tT flops per weight
    byte; HBM/MXU balance points: v5e ~240, v7x ~320, v6e ~650.
    v7x has only 64 MiB VMEM per TC -> cap the request well below physical.
    """
    kind = ""
    try:
        kind = jax.devices()[0].device_kind.lower()
    except Exception:
        pass
    vmem_cap = 128 * 1024 * 1024
    try:
        vmem_cap = int(pltpu.get_tpu_info().vmem_capacity_bytes)
    except Exception:
        pass
    if "v7" in kind or vmem_cap <= 64 * 1024 * 1024:
        return 512, 512, min(int(vmem_cap * 0.85), 56 * 1024 * 1024)
    if "v6" in kind:
        return 1024, 512, min(int(vmem_cap * 0.85), 110 * 1024 * 1024)
    # v5e / unknown
    return 512, 512, min(int(vmem_cap * 0.85), 100 * 1024 * 1024)


# ---------------------------------------------------------------------------
# Pallas kernel: one grid step == (token tile, expert, I tile)
# ---------------------------------------------------------------------------
def _moe_expert_kernel(flags_ref, pin_e_ref, pin_i_ref,
                       x_ref, gu_ref, dw_ref, rw_ref,
                       out_ref, acc_ref, *, tI, E1):
    """Fused expert MLP + weighted accumulation, with expert skipping.

    flags_ref : SMEM (n_tiles*E1,) int32  — 1 if any token in tile t routed to e
    pin_*_ref : SMEM (n_tiles*E1,) int32  — weight block index to repeat when
                                            flag==0 (DMA dedup)
    x_ref  : (tT, H)      bf16 token tile
    gu_ref : (H, 2*tI)    bf16 fused [gate | up] weight tile of current expert
    dw_ref : (tI, H)      bf16 down_proj weight tile
    rw_ref : (tT, 1)      f32 per-token weight of current expert
    out_ref: (tT, H)      output tile (model dtype), written on last (e, i)
    acc_ref: (tT, H)      f32 VMEM accumulator, resident across (e, i)
    """
    t = pl.program_id(0)
    e = pl.program_id(1)
    i = pl.program_id(2)

    @pl.when(jnp.logical_and(e == 0, i == 0))
    def _():
        acc_ref[...] = jnp.zeros_like(acc_ref)

    flag = flags_ref[t * E1 + e]

    @pl.when(flag > 0)
    def _():
        x = x_ref[...]                                                 # (tT, H) bf16
        gu = jnp.dot(x, gu_ref[...],
                     preferred_element_type=jnp.float32)               # (tT, 2*tI) f32
        g = gu[:, :tI]
        u = gu[:, tI:]
        h = (g * jax.nn.sigmoid(g)) * u                                # SiLU(g)*u, f32
        part = jnp.dot(h.astype(x.dtype), dw_ref[...],
                       preferred_element_type=jnp.float32)             # (tT, H) f32
        # routing weight applied in f32 after the down-proj (smaller tensor,
        # better numerics); distributes over I-tile partial sums.
        acc_ref[...] += rw_ref[...] * part

    @pl.when(jnp.logical_and(e == pl.num_programs(1) - 1,
                             i == pl.num_programs(2) - 1))
    def _():
        out_ref[...] = acc_ref[...].astype(out_ref.dtype)


# ---------------------------------------------------------------------------
# Wrapper: routing glue in plain JAX, experts in Pallas
# ---------------------------------------------------------------------------
@functools.partial(jax.jit,
                   static_argnames=("top_k", "norm_topk_prob",
                                    "token_tile", "i_tile"))
def quant_moe_block(hidden_states, params, *, top_k, norm_topk_prob,
                    token_tile=None, i_tile=None):
    B, S, H = hidden_states.shape
    T = B * S
    out_dtype = hidden_states.dtype

    tok_def, i_def, vmem_budget = _device_tile_defaults()
    if token_tile is None:
        token_tile = tok_def
    if i_tile is None:
        i_tile = i_def

    x_f32 = hidden_states.reshape(T, H).astype(jnp.float32)

    gate_w_all = params["gate_w_all"].astype(jnp.bfloat16)   # (E+1, H, I)
    up_w_all = params["up_w_all"].astype(jnp.bfloat16)       # (E+1, H, I)
    down_all = params["down_w_all"].astype(jnp.bfloat16)     # (E+1, I, H)
    router_w = params["router_w"]                            # (E, H) torch [out, in]
    shared_gate_w = params["shared_gate_w"]                  # (1, H)

    E = router_w.shape[0]
    E1 = E + 1
    I_dim = gate_w_all.shape[-1]

    # --- router gate + shared-expert gate: tiny lane-narrow matmuls -> XLA ---
    router_logits = x_f32 @ router_w.astype(jnp.float32).T                 # (T, E)
    shared_gate_logits = x_f32 @ shared_gate_w.astype(jnp.float32).T       # (T, 1)

    # --- softmax + top-k routing (matches F.softmax(dim=1) + torch.topk) ----
    routing_weights = jax.nn.softmax(router_logits, axis=1)
    topk_vals, topk_idx = jax.lax.top_k(routing_weights, top_k)
    if norm_topk_prob:
        topk_vals = topk_vals / topk_vals.sum(axis=-1, keepdims=True)

    one_hot = (topk_idx[..., None] == jnp.arange(E)[None, None, :])        # (T,k,E)
    dense_rw = jnp.sum(one_hot * topk_vals[..., None], axis=1)             # (T, E)
    sel_mask = one_hot.any(axis=1)                                         # (T, E)
    shared_w = jax.nn.sigmoid(shared_gate_logits)                          # (T, 1)
    rw_all = jnp.concatenate([dense_rw, shared_w], axis=1).astype(jnp.float32)

    # --- token tiling --------------------------------------------------------
    tT = min(token_tile, _round_up(T, 8))
    n_tiles = -(-T // tT)
    T_pad = n_tiles * tT

    # --- intermediate-dim tiling (decouples VMEM footprint from I) ----------
    if I_dim % i_tile == 0:
        tI = i_tile
    else:
        tI = I_dim       # TODO(synk): pad I when it is not a multiple of i_tile
    nI = I_dim // tI

    x_bf = x_f32.astype(jnp.bfloat16)
    if T_pad != T:
        x_bf = jnp.pad(x_bf, ((0, T_pad - T), (0, 0)))
        rw_all = jnp.pad(rw_all, ((0, T_pad - T), (0, 0)))
        sel_mask = jnp.pad(sel_mask, ((0, T_pad - T), (0, 0)))

    rw_all = rw_all.T.reshape(E1, T_pad, 1)                                # (E1,T,1)

    # --- per-(token-tile, expert) activity flags (shared expert always on) ---
    routed = sel_mask.reshape(n_tiles, tT, E).any(axis=1)                  # (nt, E)
    flags = jnp.concatenate(
        [routed, jnp.ones((n_tiles, 1), bool)], axis=1).astype(jnp.int32)  # (nt, E1)
    flags_flat = flags.reshape(-1)

    # pinned weight block indices: when flag==0 the index_map repeats the
    # previous step's weight block so the weight DMA is deduped/skipped.
    e_ids = jnp.tile(jnp.arange(E1, dtype=jnp.int32), n_tiles)

    def _pin_scan(carry, xs):
        last_e, last_i = carry
        f, e = xs
        pin = (last_e, last_i)
        new_e = jnp.where(f > 0, e, last_e)
        new_i = jnp.where(f > 0, jnp.int32(nI - 1), last_i)
        return (new_e, new_i), pin

    _, (pin_e_flat, pin_i_flat) = jax.lax.scan(
        _pin_scan, (jnp.int32(0), jnp.int32(0)), (flags_flat, e_ids))

    # --- fused gate|up weight, column order [g_tile0, u_tile0, g_tile1, ...] --
    # TODO(synk): move this one-time weight rearrangement out of the forward.
    gu_all = jnp.concatenate(
        [gate_w_all.reshape(E1, H, nI, tI), up_w_all.reshape(E1, H, nI, tI)],
        axis=-1).reshape(E1, H, 2 * I_dim)

    # --- index maps (scalar-prefetch refs arrive as trailing positional args) -
    def _x_map(t, e, i, flags, pe, pi):
        return (t, 0)

    def _gu_map(t, e, i, flags, pe, pi):
        idx = t * E1 + e
        on = flags[idx] > 0
        return (jnp.where(on, e, pe[idx]), 0, jnp.where(on, i, pi[idx]))

    def _dw_map(t, e, i, flags, pe, pi):
        idx = t * E1 + e
        on = flags[idx] > 0
        return (jnp.where(on, e, pe[idx]), jnp.where(on, i, pi[idx]), 0)

    def _rw_map(t, e, i, flags, pe, pi):
        return (e, t, 0)

    def _out_map(t, e, i, flags, pe, pi):
        return (t, 0)

    # --- VMEM budget (double-buffered inputs + resident acc + live f32) ------
    itemsize_out = jnp.dtype(out_dtype).itemsize
    w_bytes = 2 * (H * 2 * tI * 2 + tI * H * 2)       # gu + down bf16, 2 bufs
    x_bytes = 2 * tT * H * 2
    rw_bytes = 2 * tT * 128 * 4                       # (tT,1) pads to 128 lanes
    out_bytes = 2 * tT * H * itemsize_out
    acc_bytes = tT * H * 4
    live_bytes = tT * 2 * tI * 4 + 3 * tT * tI * 4 + tT * tI * 2   # gu,g,u,h(+bf16)
    est = w_bytes + x_bytes + rw_bytes + out_bytes + acc_bytes + live_bytes
    vmem_limit = int(min(vmem_budget, max(32 * 1024 * 1024, int(est * 1.5))))

    # --- fused expert MLPs + weighted accumulation (Pallas hot path) ---------
    kernel = functools.partial(_moe_expert_kernel, tI=tI, E1=E1)
    # TODO(synk): on v7x, if profiling shows one idle TC, keep n_tiles even and
    #             switch the token axis to pltpu.CORE_PARALLEL once MXU-bound.
    final = pl.pallas_call(
        kernel,
        out_shape=jax.ShapeDtypeStruct((T_pad, H), out_dtype),
        grid_spec=pltpu.PrefetchScalarGridSpec(
            num_scalar_prefetch=3,
            grid=(n_tiles, E1, nI),
            in_specs=[
                pl.BlockSpec((tT, H), _x_map),                             # x
                pl.BlockSpec((pl.Squeezed(), H, 2 * tI), _gu_map),         # [gate|up]
                pl.BlockSpec((pl.Squeezed(), tI, H), _dw_map),             # down
                pl.BlockSpec((pl.Squeezed(), tT, 1), _rw_map),             # rw
            ],
            out_specs=pl.BlockSpec((tT, H), _out_map),
            scratch_shapes=[pltpu.VMEM((tT, H), jnp.float32)],
        ),
        compiler_params=pltpu.CompilerParams(
            dimension_semantics=("parallel", "arbitrary", "arbitrary"),
            vmem_limit_bytes=vmem_limit),
    )(flags_flat, pin_e_flat, pin_i_flat, x_bf, gu_all, down_all, rw_all)

    final_hidden_states = final[:T].reshape(B, S, H).astype(out_dtype)
    return final_hidden_states, router_logits


# ---------------------------------------------------------------------------
# Pure-JAX reference mirroring the PyTorch forward (f32, for correctness check)
# ---------------------------------------------------------------------------
def reference_forward(hidden_states, params, *, top_k, norm_topk_prob):
    B, S, H = hidden_states.shape
    T = B * S
    x = hidden_states.reshape(T, H).astype(jnp.float32)
    router_w = params["router_w"]
    shared_gate_w = params["shared_gate_w"]
    gate_w_all = params["gate_w_all"]
    up_w_all = params["up_w_all"]
    down_w_all = params["down_w_all"]
    E = router_w.shape[0]

    router_logits = x @ router_w.T
    rw = jax.nn.softmax(router_logits, axis=1)
    vals, idx = jax.lax.top_k(rw, top_k)
    if norm_topk_prob:
        vals = vals / vals.sum(axis=-1, keepdims=True)
    dense = jnp.zeros((T, E), x.dtype).at[jnp.arange(T)[:, None], idx].set(vals)

    def mlp(xx, gw, uw, dw):
        return (jax.nn.silu(xx @ gw) * (xx @ uw)) @ dw

    out = jnp.zeros((T, H), jnp.float32)
    for e in range(E):
        out = out + dense[:, e:e + 1] * mlp(x, gate_w_all[e], up_w_all[e],
                                            down_w_all[e])
    shared = jax.nn.sigmoid(x @ shared_gate_w.T) * mlp(
        x, gate_w_all[E], up_w_all[E], down_w_all[E])
    out = out + shared
    return out.reshape(B, S, H), router_logits


# ---------------------------------------------------------------------------
if __name__ == "__main__":
    # small config consistent with the module's forward; chosen so that some
    # (token-tile, expert) pairs carry no tokens (exercises the skip path) and
    # the intermediate dim is tiled (nI = 2).
    B, S, H = 2, 64, 128         # batch, seq, hidden_dim  -> T = 128 tokens
    I = 256                      # expert intermediate size
    E = 16                       # num_experts
    TOP_K = 2                    # num_experts_per_tok
    NORM_TOPK = True             # norm_topk_prob
    TOKEN_TILE = 16              # 8 token tiles -> exercises parallel axis + flags
    I_TILE = 128                 # 2 I-tiles     -> exercises intermediate tiling

    key = jax.random.PRNGKey(0)
    ks = jax.random.split(key, 6)
    scale = 0.05
    params = {
        # stacked, pre-transposed expert weights; index E is the shared expert
        "gate_w_all": scale * jax.random.normal(ks[0], (E + 1, H, I), jnp.float32),
        "up_w_all":   scale * jax.random.normal(ks[1], (E + 1, H, I), jnp.float32),
        "down_w_all": scale * jax.random.normal(ks[2], (E + 1, I, H), jnp.float32),
        # router gate / shared-expert gate in torch [out, in] layout
        "router_w":      scale * jax.random.normal(ks[3], (E, H), jnp.float32),
        "shared_gate_w": scale * jax.random.normal(ks[4], (1, H), jnp.float32),
    }
    hidden_states = jax.random.normal(ks[5], (B, S, H), jnp.float32)

    out, logits = quant_moe_block(hidden_states, params,
                                  top_k=TOP_K, norm_topk_prob=NORM_TOPK,
                                  token_tile=TOKEN_TILE, i_tile=I_TILE)
    out = jax.block_until_ready(out)
    logits = jax.block_until_ready(logits)

    ref_out, ref_logits = reference_forward(hidden_states, params,
                                            top_k=TOP_K,
                                            norm_topk_prob=NORM_TOPK)
    assert out.shape == (B, S, H)
    assert logits.shape == (B * S, E)
    # router logits are computed in f32 identically to the reference
    assert jnp.allclose(logits, ref_logits, rtol=1e-5, atol=1e-5)
    # expert path runs matmuls in bf16 (f32 accumulation) -> loosened tolerance
    assert jnp.allclose(out, ref_out, rtol=3e-2, atol=3e-2)
    print("KERNEL_OK")
</pallas_src>

<mosaic_0001>
module attributes {stable_mosaic.version = 11 : i64} {
  func.func @_moe_expert_kernel(%arg0: i32, %arg1: i32, %arg2: i32, %arg3: memref<136xi32, #tpu.memory_space<smem>>, %arg4: memref<136xi32, #tpu.memory_space<smem>>, %arg5: memref<136xi32, #tpu.memory_space<smem>>, %arg6: memref<16x128xbf16, #tpu.memory_space<vmem>>, %arg7: memref<1x128x256xbf16, #tpu.memory_space<vmem>>, %arg8: memref<1x128x128xbf16, #tpu.memory_space<vmem>>, %arg9: memref<1x16x1xf32, #tpu.memory_space<vmem>>, %arg10: memref<16x128xf32, #tpu.memory_space<vmem>>, %arg11: memref<16x128xf32, #tpu.memory_space<vmem>>) attributes {dimension_semantics = [#tpu.dimension_semantics<parallel>, #tpu.dimension_semantics<arbitrary>, #tpu.dimension_semantics<arbitrary>], iteration_bounds = array<i64: 8, 17, 2>, scalar_prefetch = 3 : i64, scratch_operands = 1 : i64, tpu.core_type = #tpu.core_type<tc>, window_params = [{transform_indices = @transform_0, window_bounds = array<i64: 16, 128>}, {transform_indices = @transform_1, window_bounds = array<i64: 1, 128, 256>}, {transform_indices = @transform_2, window_bounds = array<i64: 1, 128, 128>}, {transform_indices = @transform_3, window_bounds = array<i64: 1, 16, 1>}, {transform_indices = @transform_4, window_bounds = array<i64: 16, 128>}]} {
    %c0_i32 = arith.constant 0 : i32
    %0 = arith.cmpi eq, %arg1, %c0_i32 : i32
    %c0_i32_0 = arith.constant 0 : i32
    %1 = arith.cmpi eq, %arg2, %c0_i32_0 : i32
    %2 = arith.andi %0, %1 : i1
    %3 = arith.extui %2 : i1 to i32
    %c0_i32_1 = arith.constant 0 : i32
    %4 = arith.cmpi ne, %3, %c0_i32_1 : i32
    scf.if %4 {
      %cst = arith.constant 0.000000e+00 : f32
      %17 = vector.broadcast %cst : f32 to vector<16x128xf32>
      %c0 = arith.constant 0 : index
      %c0_5 = arith.constant 0 : index
      %18 = vector.load %arg11[%c0, %c0_5] : memref<16x128xf32, #tpu.memory_space<vmem>>, vector<16x128xf32>
      tpu.vector_store %arg11[%c0, %c0_5], %17 {strides = array<i32>} : memref<16x128xf32, #tpu.memory_space<vmem>>, vector<16x128xf32>,
    } else {
    }
    %c17_i32 = arith.constant 17 : i32
    %5 = arith.muli %arg0, %c17_i32 : i32
    %6 = arith.addi %5, %arg1 : i32
    %7 = arith.index_cast %6 : i32 to index
    %8 = memref.load %arg3[%7] : memref<136xi32, #tpu.memory_space<smem>>
    %c0_i32_2 = arith.constant 0 : i32
    %9 = arith.cmpi sgt, %8, %c0_i32_2 : i32
    %10 = arith.extui %9 : i1 to i32
    %c0_i32_3 = arith.constant 0 : i32
    %11 = arith.cmpi ne, %10, %c0_i32_3 : i32
    scf.if %11 {
      %c0 = arith.constant 0 : index
      %c0_5 = arith.constant 0 : index
      %17 = vector.load %arg6[%c0, %c0_5] : memref<16x128xbf16, #tpu.memory_space<vmem>>, vector<16x128xbf16>
      %c0_6 = arith.constant 0 : index
      %c0_7 = arith.constant 0 : index
      %c0_8 = arith.constant 0 : index
      %18 = vector.load %arg7[%c0_6, %c0_7, %c0_8] : memref<1x128x256xbf16, #tpu.memory_space<vmem>>, vector<1x128x256xbf16>
      %19 = vector.shape_cast %18 : vector<1x128x256xbf16> to vector<128x256xbf16>
      %cst = arith.constant dense<0.000000e+00> : vector<16x256xf32>
      %20 = tpu.matmul %17, %19, %cst {dimension_numbers = #tpu.dot_dimension_numbers<[1], [0], [0], [1], [0, 0, 1, 1], [], []>} : vector<16x128xbf16>, vector<128x256xbf16>, vector<16x256xf32> -> vector<16x256xf32>
      %21 = vector.extract_strided_slice %20 {offsets = [0, 0], sizes = [16, 128], strides = [1, 1]} : vector<16x256xf32> to vector<16x128xf32>
      %22 = vector.extract_strided_slice %20 {offsets = [0, 128], sizes = [16, 128], strides = [1, 1]} : vector<16x256xf32> to vector<16x128xf32>
      %23 = arith.negf %21 : vector<16x128xf32>
      %24 = math.exp %23 : vector<16x128xf32>
      %cst_9 = arith.constant 1.000000e+00 : f32
      %25 = vector.broadcast %cst_9 : f32 to vector<16x128xf32>
      %26 = arith.addf %25, %24 : vector<16x128xf32>
      %27 = arith.divf %25, %26 : vector<16x128xf32>
      %28 = arith.mulf %21, %27 : vector<16x128xf32>
      %29 = arith.mulf %28, %22 : vector<16x128xf32>
      %30 = arith.truncf %29 : vector<16x128xf32> to vector<16x128xbf16>
      %c0_10 = arith.constant 0 : index
      %c0_11 = arith.constant 0 : index
      %c0_12 = arith.constant 0 : index
      %31 = vector.load %arg8[%c0_10, %c0_11, %c0_12] : memref<1x128x128xbf16, #tpu.memory_space<vmem>>, vector<1x128x128xbf16>
      %32 = vector.shape_cast %31 : vector<1x128x128xbf16> to vector<128x128xbf16>
      %cst_13 = arith.constant dense<0.000000e+00> : vector<16x128xf32>
      %33 = tpu.matmul %30, %32, %cst_13 {dimension_numbers = #tpu.dot_dimension_numbers<[1], [0], [0], [1], [0, 0, 1, 1], [], []>} : vector<16x128xbf16>, vector<128x128xbf16>, vector<16x128xf32> -> vector<16x128xf32>
      %c0_14 = arith.constant 0 : index
      %c0_15 = arith.constant 0 : index
      %34 = vector.load %arg11[%c0_14, %c0_15] : memref<16x128xf32, #tpu.memory_space<vmem>>, vector<16x128xf32>
      %c0_16 = arith.constant 0 : index
      %c0_17 = arith.constant 0 : index
      %c0_18 = arith.constant 0 : index
      %35 = vector.load %arg9[%c0_16, %c0_17, %c0_18] : memref<1x16x1xf32, #tpu.memory_space<vmem>>, vector<1x16x1xf32>
      %36 = vector.shape_cast %35 : vector<1x16x1xf32> to vector<16x1xf32>
      %37 = vector.broadcast %36 : vector<16x1xf32> to vector<16x128xf32>
      %38 = arith.mulf %37, %33 : vector<16x128xf32>
      %39 = arith.addf %34, %38 : vector<16x128xf32>
      %c0_19 = arith.constant 0 : index
      %c0_20 = arith.constant 0 : index
      %40 = vector.load %arg11[%c0_19, %c0_20] : memref<16x128xf32, #tpu.memory_space<vmem>>, vector<16x128xf32>
      tpu.vector_store %arg11[%c0_19, %c0_20], %39 {strides = array<i32>} : memref<16x128xf32, #tpu.memory_space<vmem>>, vector<16x128xf32>,
    } else {
    }
    %c16_i32 = arith.constant 16 : i32
    %12 = arith.cmpi eq, %arg1, %c16_i32 : i32
    %c1_i32 = arith.constant 1 : i32
    %13 = arith.cmpi eq, %arg2, %c1_i32 : i32
    %14 = arith.andi %12, %13 : i1
    %15 = arith.extui %14 : i1 to i32
    %c0_i32_4 = arith.constant 0 : i32
    %16 = arith.cmpi ne, %15, %c0_i32_4 : i32
    scf.if %16 {
      %c0 = arith.constant 0 : index
      %c0_5 = arith.constant 0 : index
      %17 = vector.load %arg11[%c0, %c0_5] : memref<16x128xf32, #tpu.memory_space<vmem>>, vector<16x128xf32>
      %c0_6 = arith.constant 0 : index
      %c0_7 = arith.constant 0 : index
      %18 = vector.load %arg10[%c0_6, %c0_7] : memref<16x128xf32, #tpu.memory_space<vmem>>, vector<16x128xf32>
      tpu.vector_store %arg10[%c0_6, %c0_7], %17 {strides = array<i32>} : memref<16x128xf32, #tpu.memory_space<vmem>>, vector<16x128xf32>,
    } else {
    }
    return
  }
  func.func @transform_0(%arg0: i32, %arg1: i32, %arg2: i32, %arg3: memref<136xi32, #tpu.memory_space<smem>>, %arg4: memref<136xi32, #tpu.memory_space<smem>>, %arg5: memref<136xi32, #tpu.memory_space<smem>>) -> (i32, i32) {
    %c0_i32 = arith.constant 0 : i32
    %c0_i32_0 = arith.constant 0 : i32
    return %arg0, %c0_i32 : i32, i32
  }
  func.func @transform_1(%arg0: i32, %arg1: i32, %arg2: i32, %arg3: memref<136xi32, #tpu.memory_space<smem>>, %arg4: memref<136xi32, #tpu.memory_space<smem>>, %arg5: memref<136xi32, #tpu.memory_space<smem>>) -> (i32, i32, i32) {
    %c17_i32 = arith.constant 17 : i32
    %0 = arith.muli %arg0, %c17_i32 : i32
    %1 = arith.addi %0, %arg1 : i32
    %2 = arith.index_cast %1 : i32 to index
    %3 = memref.load %arg3[%2] : memref<136xi32, #tpu.memory_space<smem>>
    %c0_i32 = arith.constant 0 : i32
    %4 = arith.cmpi sgt, %3, %c0_i32 : i32
    %5 = arith.index_cast %1 : i32 to index
    %6 = memref.load %arg4[%5] : memref<136xi32, #tpu.memory_space<smem>>
    %7 = arith.select %4, %arg1, %6 : i32
    %8 = arith.index_cast %1 : i32 to index
    %9 = memref.load %arg5[%8] : memref<136xi32, #tpu.memory_space<smem>>
    %10 = arith.select %4, %arg2, %9 : i32
    %c0_i32_0 = arith.constant 0 : i32
    %c0_i32_1 = arith.constant 0 : i32
    return %7, %c0_i32_0, %10 : i32, i32, i32
  }
  func.func @transform_2(%arg0: i32, %arg1: i32, %arg2: i32, %arg3: memref<136xi32, #tpu.memory_space<smem>>, %arg4: memref<136xi32, #tpu.memory_space<smem>>, %arg5: memref<136xi32, #tpu.memory_space<smem>>) -> (i32, i32, i32) {
    %c17_i32 = arith.constant 17 : i32
    %0 = arith.muli %arg0, %c17_i32 : i32
    %1 = arith.addi %0, %arg1 : i32
    %2 = arith.index_cast %1 : i32 to index
    %3 = memref.load %arg3[%2] : memref<136xi32, #tpu.memory_space<smem>>
    %c0_i32 = arith.constant 0 : i32
    %4 = arith.cmpi sgt, %3, %c0_i32 : i32
    %5 = arith.index_cast %1 : i32 to index
    %6 = memref.load %arg4[%5] : memref<136xi32, #tpu.memory_space<smem>>
    %7 = arith.select %4, %arg1, %6 : i32
    %8 = arith.index_cast %1 : i32 to index
    %9 = memref.load %arg5[%8] : memref<136xi32, #tpu.memory_space<smem>>
    %10 = arith.select %4, %arg2, %9 : i32
    %c0_i32_0 = arith.constant 0 : i32
    %c0_i32_1 = arith.constant 0 : i32
    return %7, %10, %c0_i32_0 : i32, i32, i32
  }
  func.func @transform_3(%arg0: i32, %arg1: i32, %arg2: i32, %arg3: memref<136xi32, #tpu.memory_space<smem>>, %arg4: memref<136xi32, #tpu.memory_space<smem>>, %arg5: memref<136xi32, #tpu.memory_space<smem>>) -> (i32, i32, i32) {
    %c0_i32 = arith.constant 0 : i32
    %c0_i32_0 = arith.constant 0 : i32
    return %arg1, %arg0, %c0_i32 : i32, i32, i32
  }
  func.func @transform_4(%arg0: i32, %arg1: i32, %arg2: i32, %arg3: memref<136xi32, #tpu.memory_space<smem>>, %arg4: memref<136xi32, #tpu.memory_space<smem>>, %arg5: memref<136xi32, #tpu.memory_space<smem>>) -> (i32, i32) {
    %c0_i32 = arith.constant 0 : i32
    %c0_i32_0 = arith.constant 0 : i32
    return %arg0, %c0_i32 : i32, i32
  }
}

</mosaic_0001>

<llo_original>
// kernel: custom-call
$region0: #{custom-call}
  %s0 = inlined_call_operand.vmem [shape: s32[136], index: 0, kind: output, shape index: {}]

// kernel: quant_moe_block.1
$region0: #{quant_moe_block.1}
  #allocation0 [shape = 'u32[]', space=smem, size = 0x4, offset = 0x4, fixed_abs, tag = 'smem constant byte address 0x4 - core index']
  #allocation1 [shape = 'u32[144,128]{1,0:T(1,128)}', space=vmem, size = 0x12000, scoped, tag = 'internal scratch']
  #allocation2 [shape = 'f32[16,128]{1,0:T(8,128)}', space=vmem, size = 0x2000, scoped, tag = 'scratch operand']
  #allocation3 [shape = 's32[1]{0}', space=sflag, size = 0x4, scoped, tag = 'scoped memory for quant_moe_block.1']
  #allocation4 [shape = 'u8[1024]{0}', space=smem, size = 0x400, scoped, tag = 'prefetched SMEM operand 0']
  #allocation5 [shape = 'u8[1024]{0}', space=smem, size = 0x400, scoped, tag = 'prefetched SMEM operand 1']
  #allocation6 [shape = 'u8[1024]{0}', space=smem, size = 0x400, scoped, tag = 'prefetched SMEM operand 2']
  %s0 = inlined_call_operand.vmem [shape: s32[136], index: 0, kind: input, shape index: {}]
  %s1 = inlined_call_operand.vmem [shape: s32[136], index: 1, kind: input, shape index: {}]
  %s2 = inlined_call_operand.vmem [shape: s32[136], index: 2, kind: input, shape index: {}]
  %s3 = inlined_call_operand.vmem [shape: bf16[128,128], index: 3, kind: input, shape index: {}]
  %s4 = inlined_call_operand.vmem [shape: bf16[17,128,512], index: 4, kind: input, shape index: {}]
  %s5 = inlined_call_operand.vmem [shape: bf16[17,256,128], index: 5, kind: input, shape index: {}]
  %s6 = inlined_call_operand.vmem [shape: f32[17,128,1], index: 6, kind: input, shape index: {}]
  %s7 = inlined_call_operand.hbm [shape: f32[128,128], index: 7, kind: output, shape index: {}]
  %s8 = sld [smem:[#allocation0]]
  $region99: #{quant_moe_block.1} parent=0
    _
  %s10 = ssub.s32 1, %s8
  %s11 = scalar_select 0, %s10, %s8
  %s12 = sshll.u32 %s0, 4
  %s13 = int_to_ptr.vmem [resolvable:$true] %s12
  %15 = dma.vmem_to_smem %s13, 32, [#allocation4], [#allocation3]
  %s16 = sshll.u32 %s1, 4
  %s17 = int_to_ptr.vmem [resolvable:$true] %s16
  %19 = dma.vmem_to_smem %s17, 32, [#allocation5], [#allocation3]
  %s20 = sshll.u32 %s2, 4
  %s21 = int_to_ptr.vmem [resolvable:$true] %s20
  %23 = dma.vmem_to_smem %s21, 32, [#allocation6], [#allocation3]
  %24 = dma.done [#allocation3], 96
  %25 = sfence
  $region1: #{quant_moe_block.1} parent=0
    #allocation7 [shape = 'u8[131072]{0}', space=vmem, size = 0x20000, scoped, tag = 'input window, operand 4']
    #allocation8 [shape = 'u8[16384]{0}', space=vmem, size = 0x4000, scoped, tag = 'output window, operand 0']
    #allocation9 [shape = 's32[2]{0}', space=sflag, size = 0x8, scoped, tag = 'scoped memory for quant_moe_block.1']
    %26 = vsyncpa [#allocation9], 0
    %s27 = scalar_lea.sflag [#allocation9], 1
    %28 = vsyncpa %s27, 0
    loop: start=0, step=1, limit=274
    $region2: #{quant_moe_block.1} parent=1 // loop_pre_header
      _
    $region3: #{quant_moe_block.1} parent=1 // loop_header
      %s30 = sphi 0, %s34
      %p31 = scmp.ge.s32.totalorder %s30, 274
      %s37 = sphi 0, %s56
      %s38 = sphi 0, %s52
      %s39 = sphi 0, %s48
      %s40 = sphi 0, %s37
      %s41 = sphi 0, %s38
      %s42 = sphi 0, %s39
      %s43 = sphi 0, %s40
      %s44 = sphi 0, %s41
      %s45 = sphi 0, %s42
      %s59 = sphi 0, %s61
      %s62 = sphi 0, %s59
      %s63 = sphi 0, %s62
      %s79 = sphi 0, %s63
      %s103 = sphi 0, %s105
      %s106 = sphi 0, %s103
      %s107 = sphi 0, %s106
      %s123 = sphi 0, %s107
      %s147 = sphi 0, %s149
      %s150 = sphi 0, %s147
      %s151 = sphi 0, %s150
      %s167 = sphi 0, %s151
      %s175 = sphi 0, %s177
      %s178 = sphi 0, %s175
      %s179 = sphi 0, %s178
      %s195 = sphi 0, %s179
      %s201 = sphi 0, %s203
      %s204 = sphi 0, %s201
      %s205 = sphi 0, %s204
      %s221 = sphi 0, %s205
    $region4: #{quant_moe_block.1} parent=1 // loop_header_branch
      %33 = sbr.rel (%p31) target = $region8
    $region5: #{quant_moe_block.1} parent=1 // loop_body
      %s35 = ssub.s32 %s30, 1
      %s36 = ssub.s32 %s30, 2
      %s46 = sadd.s32 1, %s39
      %p47 = scmp.ge.s32.totalorder %s46, 2
      %s48 = scalar_select %p47, 0, %s46
      %s49 = sadd.s32 1, %s38
      %s50 = scalar_select %p47, %s49, %s38
      %p51 = scmp.ge.s32.totalorder %s50, 17
      %s52 = scalar_select %p51, 0, %s50
      %s53 = sadd.s32 1, %s37
      %s54 = scalar_select %p51, %s53, %s37
      %p55 = scmp.ge.s32.totalorder %s54, 8
      %s56 = scalar_select %p55, 0, %s54
      %s57 = ssub.s32 %s37, %s56
      %p58 = scmp.eq.s32.totalorder %s57, 0
      %s60 = sadd.s32 %s59, 1
      %s61 = scalar_select %p58, %s59, %s60
      %p64 = pneg %p58
      %p65 = scmp.eq.s32.totalorder %s30, 271
      %p66 = por %p64, %p65
      %p67 = scmp.ne.s32.totalorder %s59, %s62
      %p68 = scmp.eq.s32.totalorder %s30, 0
      %p69 = por %p67, %p68
      %p70 = scmp.ne.s32.totalorder %s59, %s62
      %p71 = scmp.eq.s32.totalorder %s35, 271
      %p72 = por %p70, %p71
      %p73 = scmp.ne.s32.totalorder %s62, %s63
      %p74 = scmp.eq.s32.totalorder %s35, 0
      %p75 = por %p73, %p74
      %p76 = scmp.ne.s32.totalorder %s62, %s63
      %p77 = scmp.eq.s32.totalorder %s36, 271
      %p78 = por %p76, %p77
      %p80 = scmp.ne.s32.totalorder %s63, %s79
      %p81 = scmp.eq.s32.totalorder %s36, 0
      %p82 = por %p80, %p81
      %s83 = smul.u32 %s37, 17
      %s84 = sadd.s32 %s83, %s38
      %s85 = sld [smem:[#allocation4 + %s84]]
      %p86 = scmp.gt.s32.totalorder %s85, 0
      %s87 = sld [smem:[#allocation5 + %s84]]
      %s88 = scalar_select %p86, %s38, %s87
      %s89 = sld [smem:[#allocation6 + %s84]]
      %s90 = scalar_select %p86, %s39, %s89
      %s91 = smul.u32 %s56, 17
      %s92 = sadd.s32 %s91, %s52
      %s93 = sld [smem:[#allocation4 + %s92]]
      %p94 = scmp.gt.s32.totalorder %s93, 0
      %s95 = sld [smem:[#allocation5 + %s92]]
      %s96 = scalar_select %p94, %s52, %s95
      %s97 = sld [smem:[#allocation6 + %s92]]
      %s98 = scalar_select %p94, %s48, %s97
      %s99 = ssub.s32 %s88, %s96
      %s100 = ssub.s32 %s90, %s98
      %s101 = sor.u32 %s99, %s100
      %p102 = scmp.eq.s32.totalorder %s101, 0
      %s104 = sadd.s32 %s103, 1
      %s105 = scalar_select %p102, %s103, %s104
      %p108 = pneg %p102
      %p109 = scmp.eq.s32.totalorder %s30, 271
      %p110 = por %p108, %p109
      %p111 = scmp.ne.s32.totalorder %s103, %s106
      %p112 = scmp.eq.s32.totalorder %s30, 0
      %p113 = por %p111, %p112
      %p114 = scmp.ne.s32.totalorder %s103, %s106
      %p115 = scmp.eq.s32.totalorder %s35, 271
      %p116 = por %p114, %p115
      %p117 = scmp.ne.s32.totalorder %s106, %s107
      %p118 = scmp.eq.s32.totalorder %s35, 0
      %p119 = por %p117, %p118
      %p120 = scmp.ne.s32.totalorder %s106, %s107
      %p121 = scmp.eq.s32.totalorder %s36, 271
      %p122 = por %p120, %p121
      %p124 = scmp.ne.s32.totalorder %s107, %s123
      %p125 = scmp.eq.s32.totalorder %s36, 0
      %p126 = por %p124, %p125
      %s127 = smul.u32 %s37, 17
      %s128 = sadd.s32 %s127, %s38
      %s129 = sld [smem:[#allocation4 + %s128]]
      %p130 = scmp.gt.s32.totalorder %s129, 0
      %s131 = sld [smem:[#allocation5 + %s128]]
      %s132 = scalar_select %p130, %s38, %s131
      %s133 = sld [smem:[#allocation6 + %s128]]
      %s134 = scalar_select %p130, %s39, %s133
      %s135 = smul.u32 %s56, 17
      %s136 = sadd.s32 %s135, %s52
      %s137 = sld [smem:[#allocation4 + %s136]]
      %p138 = scmp.gt.s32.totalorder %s137, 0
      %s139 = sld [smem:[#allocation5 + %s136]]
      %s140 = scalar_select %p138, %s52, %s139
      %s141 = sld [smem:[#allocation6 + %s136]]
      %s142 = scalar_select %p138, %s48, %s141
      %s143 = ssub.s32 %s132, %s140
      %s144 = ssub.s32 %s134, %s142
      %s145 = sor.u32 %s143, %s144
      %p146 = scmp.eq.s32.totalorder %s145, 0
      %s148 = sadd.s32 %s147, 1
      %s149 = scalar_select %p146, %s147, %s148
      %p152 = pneg %p146
      %p153 = scmp.eq.s32.totalorder %s30, 271
      %p154 = por %p152, %p153
      %p155 = scmp.ne.s32.totalorder %s147, %s150
      %p156 = scmp.eq.s32.totalorder %s30, 0
      %p157 = por %p155, %p156
      %p158 = scmp.ne.s32.totalorder %s147, %s150
      %p159 = scmp.eq.s32.totalorder %s35, 271
      %p160 = por %p158, %p159
      %p161 = scmp.ne.s32.totalorder %s150, %s151
      %p162 = scmp.eq.s32.totalorder %s35, 0
      %p163 = por %p161, %p162
      %p164 = scmp.ne.s32.totalorder %s150, %s151
      %p165 = scmp.eq.s32.totalorder %s36, 271
      %p166 = por %p164, %p165
      %p168 = scmp.ne.s32.totalorder %s151, %s167
      %p169 = scmp.eq.s32.totalorder %s36, 0
      %p170 = por %p168, %p169
      %s171 = ssub.s32 %s38, %s52
      %s172 = ssub.s32 %s37, %s56
      %s173 = sor.u32 %s171, %s172
      %p174 = scmp.eq.s32.totalorder %s173, 0
      %s176 = sadd.s32 %s175, 1
      %s177 = scalar_select %p174, %s175, %s176
      %p180 = pneg %p174
      %p181 = scmp.eq.s32.totalorder %s30, 271
      %p182 = por %p180, %p181
      %p183 = scmp.ne.s32.totalorder %s175, %s178
      %p184 = scmp.eq.s32.totalorder %s30, 0
      %p185 = por %p183, %p184
      %p186 = scmp.ne.s32.totalorder %s175, %s178
      %p187 = scmp.eq.s32.totalorder %s35, 271
      %p188 = por %p186, %p187
      %p189 = scmp.ne.s32.totalorder %s178, %s179
      %p190 = scmp.eq.s32.totalorder %s35, 0
      %p191 = por %p189, %p190
      %p192 = scmp.ne.s32.totalorder %s178, %s179
      %p193 = scmp.eq.s32.totalorder %s36, 271
      %p194 = por %p192, %p193
      %p196 = scmp.ne.s32.totalorder %s179, %s195
      %p197 = scmp.eq.s32.totalorder %s36, 0
      %p198 = por %p196, %p197
      %s199 = ssub.s32 %s37, %s56
      %p200 = scmp.eq.s32.totalorder %s199, 0
      %s202 = sadd.s32 %s201, 1
      %s203 = scalar_select %p200, %s201, %s202
      %p206 = pneg %p200
      %p207 = scmp.eq.s32.totalorder %s30, 271
      %p208 = por %p206, %p207
      %p209 = scmp.ne.s32.totalorder %s201, %s204
      %p210 = scmp.eq.s32.totalorder %s30, 0
      %p211 = por %p209, %p210
      %p212 = scmp.ne.s32.totalorder %s201, %s204
      %p213 = scmp.eq.s32.totalorder %s35, 271
      %p214 = por %p212, %p213
      %p215 = scmp.ne.s32.totalorder %s204, %s205
      %p216 = scmp.eq.s32.totalorder %s35, 0
      %p217 = por %p215, %p216
      %p218 = scmp.ne.s32.totalorder %s204, %s205
      %p219 = scmp.eq.s32.totalorder %s36, 271
      %p220 = por %p218, %p219
      %p222 = scmp.ne.s32.totalorder %s205, %s221
      %p223 = scmp.eq.s32.totalorder %s36, 0
      %p224 = por %p222, %p223
      %p225 = scmp.le.s32.totalorder 1, %s30
      %p226 = scmp.lt.s32.totalorder %s30, 273
      %p227 = pnand %p225, %p226
      %p228 = pneg %p227
      // Predicated region
      $region9: #{quant_moe_block.1} parent=5 // pred_check
        _
      $region10: #{quant_moe_block.1} parent=5 // pred_check_branch
        %230 = sbr.rel (%p227) target = $region12
      $region11: #{quant_moe_block.1} parent=5 // pred_region
        %s231 = ssub.s32 %s30, 1
      $region12: #{quant_moe_block.1} parent=5 // pred_fallthru
        _
      %p232 = scmp.lt.s32.totalorder %s30, 272
      // Predicated region
      $region13: #{quant_moe_block.1} parent=5 // pred_check
        %p233 = pneg %p232
      $region14: #{quant_moe_block.1} parent=5 // pred_check_branch
        %235 = sbr.rel (%p233) target = $region16
      $region15: #{quant_moe_block.1} parent=5 // pred_region
        // Predicated region
        $region17: #{quant_moe_block.1} parent=15 // pred_check
          %p236 = pneg %p69
        $region18: #{quant_moe_block.1} parent=15 // pred_check_branch
          %238 = sbr.rel (%p236) target = $region20
        $region19: #{quant_moe_block.1} parent=15 // pred_region
          %s239 = smul.u32 2, %s37
          %p240 = scmp.lt.s32.totalorder %s239, 15
          %s241 = scalar_select %p240, %s239, 15
          %s242 = smul.addr %s241, 4
          %s243 = scalar_lea.vmem %s3, %s242
          %s244 = smul.u32 2, %s37
        $region20: #{quant_moe_block.1} parent=15 // pred_fallthru
          _
        // Predicated region
        $region21: #{quant_moe_block.1} parent=15 // pred_check
          %p245 = pneg %p113
        $region22: #{quant_moe_block.1} parent=15 // pred_check_branch
          %247 = sbr.rel (%p245) target = $region24
        $region23: #{quant_moe_block.1} parent=15 // pred_region
          %s248 = sand.u32 %s103, 1
          %s249 = sand.u32 %s103, 1
          %s250 = smul.addr %s249, 128
          %s251 = scalar_lea.vmem [#allocation7], %s250
          %s252 = smul.u32 %s37, 17
          %s253 = sadd.s32 %s252, %s38
          %s254 = sld [smem:[#allocation4 + %s253]]
          %p255 = scmp.gt.s32.totalorder %s254, 0
          %s256 = sld [smem:[#allocation5 + %s253]]
          %s257 = scalar_select %p255, %s38, %s256
          %s258 = sld [smem:[#allocation6 + %s253]]
          %s259 = scalar_select %p255, %s39, %s258
          %s260 = smul.u32 2, %s259
          %s261 = smul.addr %s257, 64
          %s262 = sadd.s32 %s260, %s261
          %s263 = smul.addr %s262, 4
          %s264 = scalar_lea.vmem %s4, %s263
          // Predicated region
          $region25: #{quant_moe_block.1} parent=23 // pred_check
            _
          $region26: #{quant_moe_block.1} parent=23 // pred_check_branch
            %266 = sbr.rel (0) target = $region28
          $region27: #{quant_moe_block.1} parent=23 // pred_region
            // Predicated region
            $region29: #{quant_moe_block.1} parent=27 // pred_check
              _
            $region30: #{quant_moe_block.1} parent=27 // pred_check_branch
              %268 = sbr.rel (0) target = $region32
            $region31: #{quant_moe_block.1} parent=27 // pred_region
              // Predicated region
              $region44: #{quant_moe_block.1} parent=31 // pred_check
                _
              $region45: #{quant_moe_block.1} parent=31 // pred_check_branch
                %313 = sbr.rel (0) target = $region47
              $region46: #{quant_moe_block.1} parent=31 // pred_region
                loop: start=0, step=1, limit=1
                $region48: #{quant_moe_block.1} parent=46 // loop_pre_header
                  _
                $region49: #{quant_moe_block.1} parent=46 // loop_header
                  %s315 = sphi 0, %s319
                  %p316 = scmp.ge.s32.totalorder %s315, 1
                  %s320 = sphi %s264, %s264
                  %s321 = sphi %s251, %s251
                $region50: #{quant_moe_block.1} parent=46 // loop_header_branch
                  %318 = sbr.rel (%p316) target = $region54
                $region51: #{quant_moe_block.1} parent=46 // loop_body
                  %v322 = vld [vmem:[%s320] sm:$0xff]
                  %323 = vst [vmem:[%s321] sm:$0xff] %v322
                  %v324 = vld [vmem:[%s320 + $0x10] sm:$0xff]
                  %325 = vst [vmem:[%s321 + $0x8] sm:$0xff] %v324
                  %v326 = vld [vmem:[%s320 + $0x20] sm:$0xff]
                  %327 = vst [vmem:[%s321 + $0x10] sm:$0xff] %v326
                  %v328 = vld [vmem:[%s320 + $0x30] sm:$0xff]
                  %329 = vst [vmem:[%s321 + $0x18] sm:$0xff] %v328
                  %v330 = vld [vmem:[%s320 + $0x40] sm:$0xff]
                  %331 = vst [vmem:[%s321 + $0x20] sm:$0xff] %v330
                  %v332 = vld [vmem:[%s320 + $0x50] sm:$0xff]
                  %333 = vst [vmem:[%s321 + $0x28] sm:$0xff] %v332
                  %v334 = vld [vmem:[%s320 + $0x60] sm:$0xff]
                  %335 = vst [vmem:[%s321 + $0x30] sm:$0xff] %v334
                  %v336 = vld [vmem:[%s320 + $0x70] sm:$0xff]
                  %337 = vst [vmem:[%s321 + $0x38] sm:$0xff] %v336
                  %v338 = vld [vmem:[%s320 + $0x80] sm:$0xff]
                  %339 = vst [vmem:[%s321 + $0x40] sm:$0xff] %v338
                  %v340 = vld [vmem:[%s320 + $0x90] sm:$0xff]
                  %341 = vst [vmem:[%s321 + $0x48] sm:$0xff] %v340
                  %v342 = vld [vmem:[%s320 + $0xa0] sm:$0xff]
                  %343 = vst [vmem:[%s321 + $0x50] sm:$0xff] %v342
                  %v344 = vld [vmem:[%s320 + $0xb0] sm:$0xff]
                  %345 = vst [vmem:[%s321 + $0x58] sm:$0xff] %v344
                  %v346 = vld [vmem:[%s320 + $0xc0] sm:$0xff]
                  %347 = vst [vmem:[%s321 + $0x60] sm:$0xff] %v346
                  %v348 = vld [vmem:[%s320 + $0xd0] sm:$0xff]
                  %349 = vst [vmem:[%s321 + $0x68] sm:$0xff] %v348
                  %v350 = vld [vmem:[%s320 + $0xe0] sm:$0xff]
                  %351 = vst [vmem:[%s321 + $0x70] sm:$0xff] %v350
                  %v352 = vld [vmem:[%s320 + $0xf0] sm:$0xff]
                  %353 = vst [vmem:[%s321 + $0x78] sm:$0xff] %v352
                $region52: #{quant_moe_block.1} parent=46 // loop_footer
                  %s319 = sadd.s32 1, %s315
                $region53: #{quant_moe_block.1} parent=46 // loop_footer_branch
                  %314 = sbr.rel target = $region49
                $region54: #{quant_moe_block.1} parent=46 // loop_exit
                  _
              $region47: #{quant_moe_block.1} parent=31 // pred_fallthru
                _
              // Predicated region
              $region55: #{quant_moe_block.1} parent=31 // pred_check
                _
              $region56: #{quant_moe_block.1} parent=31 // pred_check_branch
                %355 = sbr.rel target = $region58
              $region57: #{quant_moe_block.1} parent=31 // pred_region
                _
              $region58: #{quant_moe_block.1} parent=31 // pred_fallthru
                _
            $region32: #{quant_moe_block.1} parent=27 // pred_fallthru
              _
            // Predicated region
            $region33: #{quant_moe_block.1} parent=27 // pred_check
              _
            $region34: #{quant_moe_block.1} parent=27 // pred_check_branch
              %270 = sbr.rel target = $region36
            $region35: #{quant_moe_block.1} parent=27 // pred_region
              loop: start=0, step=1, limit=1
              $region37: #{quant_moe_block.1} parent=35 // loop_pre_header
                _
              $region38: #{quant_moe_block.1} parent=35 // loop_header
                %s273 = sphi 0, %s277
                %p274 = scmp.ge.s32.totalorder %s273, 1
                %s278 = sphi %s264, %s264
                %s279 = sphi %s251, %s251
              $region39: #{quant_moe_block.1} parent=35 // loop_header_branch
                %276 = sbr.rel (%p274) target = $region43
              $region40: #{quant_moe_block.1} parent=35 // loop_body
                %v280 = vld [vmem:[%s278] sm:$0xff]
                %281 = vst [vmem:[%s279] sm:$0xff] %v280
                %v282 = vld [vmem:[%s278 + $0x10] sm:$0xff]
                %283 = vst [vmem:[%s279 + $0x8] sm:$0xff] %v282
                %v284 = vld [vmem:[%s278 + $0x20] sm:$0xff]
                %285 = vst [vmem:[%s279 + $0x10] sm:$0xff] %v284
                %v286 = vld [vmem:[%s278 + $0x30] sm:$0xff]
                %287 = vst [vmem:[%s279 + $0x18] sm:$0xff] %v286
                %v288 = vld [vmem:[%s278 + $0x40] sm:$0xff]
                %289 = vst [vmem:[%s279 + $0x20] sm:$0xff] %v288
                %v290 = vld [vmem:[%s278 + $0x50] sm:$0xff]
                %291 = vst [vmem:[%s279 + $0x28] sm:$0xff] %v290
                %v292 = vld [vmem:[%s278 + $0x60] sm:$0xff]
                %293 = vst [vmem:[%s279 + $0x30] sm:$0xff] %v292
                %v294 = vld [vmem:[%s278 + $0x70] sm:$0xff]
                %295 = vst [vmem:[%s279 + $0x38] sm:$0xff] %v294
                %v296 = vld [vmem:[%s278 + $0x80] sm:$0xff]
                %297 = vst [vmem:[%s279 + $0x40] sm:$0xff] %v296
                %v298 = vld [vmem:[%s278 + $0x90] sm:$0xff]
                %299 = vst [vmem:[%s279 + $0x48] sm:$0xff] %v298
                %v300 = vld [vmem:[%s278 + $0xa0] sm:$0xff]
                %301 = vst [vmem:[%s279 + $0x50] sm:$0xff] %v300
                %v302 = vld [vmem:[%s278 + $0xb0] sm:$0xff]
                %303 = vst [vmem:[%s279 + $0x58] sm:$0xff] %v302
                %v304 = vld [vmem:[%s278 + $0xc0] sm:$0xff]
                %305 = vst [vmem:[%s279 + $0x60] sm:$0xff] %v304
                %v306 = vld [vmem:[%s278 + $0xd0] sm:$0xff]
                %307 = vst [vmem:[%s279 + $0x68] sm:$0xff] %v306
                %v308 = vld [vmem:[%s278 + $0xe0] sm:$0xff]
                %309 = vst [vmem:[%s279 + $0x70] sm:$0xff] %v308
                %v310 = vld [vmem:[%s278 + $0xf0] sm:$0xff]
                %311 = vst [vmem:[%s279 + $0x78] sm:$0xff] %v310
              $region41: #{quant_moe_block.1} parent=35 // loop_footer
                %s277 = sadd.s32 1, %s273
              $region42: #{quant_moe_block.1} parent=35 // loop_footer_branch
                %272 = sbr.rel target = $region38
              $region43: #{quant_moe_block.1} parent=35 // loop_exit
                _
            $region36: #{quant_moe_block.1} parent=27 // pred_fallthru
              _
          $region28: #{quant_moe_block.1} parent=23 // pred_fallthru
            _
          %356 = vnop
        $region24: #{quant_moe_block.1} parent=15 // pred_fallthru
          _
        // Predicated region
        $region59: #{quant_moe_block.1} parent=15 // pred_check
          %p357 = pneg %p157
        $region60: #{quant_moe_block.1} parent=15 // pred_check_branch
          %359 = sbr.rel (%p357) target = $region62
        $region61: #{quant_moe_block.1} parent=15 // pred_region
          %s360 = smul.u32 %s37, 17
          %s361 = sadd.s32 %s360, %s38
          %s362 = sld [smem:[#allocation4 + %s361]]
          %p363 = scmp.gt.s32.totalorder %s362, 0
          %s364 = sld [smem:[#allocation5 + %s361]]
          %s365 = scalar_select %p363, %s38, %s364
          %s366 = sld [smem:[#allocation6 + %s361]]
          %s367 = scalar_select %p363, %s39, %s366
          %s368 = smul.u32 16, %s367
          %p369 = scmp.lt.s32.totalorder %s365, 16
          %s370 = scalar_select %p369, %s365, 16
          %p371 = scmp.lt.s32.totalorder %s368, 31
          %s372 = scalar_select %p371, %s368, 31
          %s373 = smul.addr %s370, 32
          %s374 = sadd.s32 %s372, %s373
          %s375 = smul.addr %s374, 4
          %s376 = scalar_lea.vmem %s5, %s375
          %s377 = smul.u32 %s37, 17
          %s378 = sadd.s32 %s377, %s38
          %s379 = sld [smem:[#allocation4 + %s378]]
          %p380 = scmp.gt.s32.totalorder %s379, 0
          %s381 = sld [smem:[#allocation5 + %s378]]
          %s382 = scalar_select %p380, %s38, %s381
          %s383 = sld [smem:[#allocation6 + %s378]]
          %s384 = scalar_select %p380, %s39, %s383
          %s385 = smul.u32 16, %s384
        $region62: #{quant_moe_block.1} parent=15 // pred_fallthru
          _
        // Predicated region
        $region63: #{quant_moe_block.1} parent=15 // pred_check
          %p386 = pneg %p185
        $region64: #{quant_moe_block.1} parent=15 // pred_check_branch
          %388 = sbr.rel (%p386) target = $region66
        $region65: #{quant_moe_block.1} parent=15 // pred_region
          %s389 = smul.u32 2, %s37
          %p390 = scmp.lt.s32.totalorder %s38, 16
          %s391 = scalar_select %p390, %s38, 16
          %p392 = scmp.lt.s32.totalorder %s389, 15
          %s393 = scalar_select %p392, %s389, 15
          %s394 = smul.addr %s391, 16
          %s395 = sadd.s32 %s393, %s394
          %s396 = smul.addr %s395, 8
          %s397 = scalar_lea.vmem %s6, %s396
          %s398 = smul.u32 2, %s37
        $region66: #{quant_moe_block.1} parent=15 // pred_fallthru
          _
      $region16: #{quant_moe_block.1} parent=5 // pred_fallthru
        _
      %p399 = scmp.le.s32.totalorder 1, %s30
      %p400 = scmp.lt.s32.totalorder %s30, 273
      %p401 = pnand %p399, %p400
      %p402 = pneg %p401
      // Predicated region
      $region67: #{quant_moe_block.1} parent=5 // pred_check
        _
      $region68: #{quant_moe_block.1} parent=5 // pred_check_branch
        %404 = sbr.rel (%p401) target = $region70
      $region69: #{quant_moe_block.1} parent=5 // pred_region
        %s405 = ssub.s32 %s30, 1
        %s406 = sand.u32 %s106, 1
        %s407 = sand.u32 %s106, 1
        %s408 = smul.addr %s407, 128
        %s409 = scalar_lea.vmem [#allocation7], %s408
        // Predicated region
        $region71: #{quant_moe_block.1} parent=69 // pred_check
          %p410 = pneg %p119
        $region72: #{quant_moe_block.1} parent=69 // pred_check_branch
          %412 = sbr.rel (%p410) target = $region74
        $region73: #{quant_moe_block.1} parent=69 // pred_region
          _
        $region74: #{quant_moe_block.1} parent=69 // pred_fallthru
          _
        %s413 = smul.u32 2, %s40
        %p414 = scmp.lt.s32.totalorder %s413, 15
        %s415 = scalar_select %p414, %s413, 15
        %s416 = smul.addr %s415, 4
        %s417 = scalar_lea.vmem %s3, %s416
        %p418 = pneg %p75
        %p419 = pneg %p72
        %s420 = sand.u32 %s106, 1
        %s421 = sand.u32 %s106, 1
        %s422 = smul.addr %s421, 128
        %s423 = scalar_lea.vmem [#allocation7], %s422
        %p424 = pneg %p119
        %p425 = pneg %p116
        %s426 = smul.u32 %s40, 17
        %s427 = sadd.s32 %s426, %s41
        %s428 = sld [smem:[#allocation4 + %s427]]
        %p429 = scmp.gt.s32.totalorder %s428, 0
        %s430 = sld [smem:[#allocation5 + %s427]]
        %s431 = scalar_select %p429, %s41, %s430
        %s432 = sld [smem:[#allocation6 + %s427]]
        %s433 = scalar_select %p429, %s42, %s432
        %s434 = smul.u32 16, %s433
        %p435 = scmp.lt.s32.totalorder %s431, 16
        %s436 = scalar_select %p435, %s431, 16
        %p437 = scmp.lt.s32.totalorder %s434, 31
        %s438 = scalar_select %p437, %s434, 31
        %s439 = smul.addr %s436, 32
        %s440 = sadd.s32 %s438, %s439
        %s441 = smul.addr %s440, 4
        %s442 = scalar_lea.vmem %s5, %s441
        %p443 = pneg %p163
        %p444 = pneg %p160
        %s445 = smul.u32 2, %s40
        %p446 = scmp.lt.s32.totalorder %s41, 16
        %s447 = scalar_select %p446, %s41, 16
        %p448 = scmp.lt.s32.totalorder %s445, 15
        %s449 = scalar_select %p448, %s445, 15
        %s450 = smul.addr %s447, 16
        %s451 = sadd.s32 %s449, %s450
        %s452 = smul.addr %s451, 8
        %s453 = scalar_lea.vmem %s6, %s452
        %p454 = pneg %p191
        %p455 = pneg %p188
        %p456 = pneg %p217
        %p457 = pneg %p214
        %s458 = sand.u32 %s204, 1
        %s459 = scalar_lea.sflag [#allocation9], %s458
        %s460 = sand.u32 %s204, 1
        %s461 = smul.addr %s460, 16
        %s462 = scalar_lea.vmem [#allocation8], %s461
        %s463 = smul.u32 2, %s40
        %p464 = scmp.lt.s32.totalorder %s463, 15
        %s465 = scalar_select %p464, %s463, 15
        %s466 = smul.addr %s465, 4
        %s467 = scalar_lea.vmem %s3, %s466
        %s468 = smul.u32 2, %s40
        %s469 = smul.u32 %s40, 17
        %s470 = sadd.s32 %s469, %s41
        %s471 = sld [smem:[#allocation4 + %s470]]
        %p472 = scmp.gt.s32.totalorder %s471, 0
        %s473 = sld [smem:[#allocation5 + %s470]]
        %s474 = scalar_select %p472, %s41, %s473
        %s475 = sld [smem:[#allocation6 + %s470]]
        %s476 = scalar_select %p472, %s42, %s475
        %s477 = smul.u32 2, %s476
        %s478 = smul.u32 %s40, 17
        %s479 = sadd.s32 %s478, %s41
        %s480 = sld [smem:[#allocation4 + %s479]]
        %p481 = scmp.gt.s32.totalorder %s480, 0
        %s482 = sld [smem:[#allocation5 + %s479]]
        %s483 = scalar_select %p481, %s41, %s482
        %s484 = sld [smem:[#allocation6 + %s479]]
        %s485 = scalar_select %p481, %s42, %s484
        %s486 = smul.u32 16, %s485
        %p487 = scmp.lt.s32.totalorder %s483, 16
        %s488 = scalar_select %p487, %s483, 16
        %p489 = scmp.lt.s32.totalorder %s486, 31
        %s490 = scalar_select %p489, %s486, 31
        %s491 = smul.addr %s488, 32
        %s492 = sadd.s32 %s490, %s491
        %s493 = smul.addr %s492, 4
        %s494 = scalar_lea.vmem %s5, %s493
        %s495 = smul.u32 %s40, 17
        %s496 = sadd.s32 %s495, %s41
        %s497 = sld [smem:[#allocation4 + %s496]]
        %p498 = scmp.gt.s32.totalorder %s497, 0
        %s499 = sld [smem:[#allocation5 + %s496]]
        %s500 = scalar_select %p498, %s41, %s499
        %s501 = sld [smem:[#allocation6 + %s496]]
        %s502 = scalar_select %p498, %s42, %s501
        %s503 = smul.u32 16, %s502
        %s504 = smul.u32 2, %s40
        %p505 = scmp.lt.s32.totalorder %s41, 16
        %s506 = scalar_select %p505, %s41, 16
        %p507 = scmp.lt.s32.totalorder %s504, 15
        %s508 = scalar_select %p507, %s504, 15
        %s509 = smul.addr %s506, 16
        %s510 = sadd.s32 %s508, %s509
        %s511 = smul.addr %s510, 8
        %s512 = scalar_lea.vmem %s6, %s511
        %s513 = smul.u32 2, %s40
        %s514 = smul.u32 2, %s40
        %p516 = scmp.eq.s32.totalorder %s41, 0
        %p517 = scmp.eq.s32.totalorder %s42, 0
        %p518 = pnand %p516, %p517
        %p519 = pneg %p518
        // Predicated region
        $region75: #{quant_moe_block.1} parent=69 // pred_check
          _
        $region76: #{quant_moe_block.1} parent=69 // pred_check_branch
          %521 = sbr.rel (%p518) target = $region78
        $region77: #{quant_moe_block.1} parent=69 // pred_region
          %522 = vst [vmem:[#allocation2] sm:$0xff] 0.0
          %523 = vst [vmem:[#allocation2 + $0x8] sm:$0xff] 0.0
        $region78: #{quant_moe_block.1} parent=69 // pred_fallthru
          _
        %s524 = smul.u32 %s40, 17
        %s525 = sadd.s32 %s524, %s41
        %s526 = sld [smem:[#allocation4 + %s525]]
        %p527 = scmp.gt.s32.totalorder %s526, 0
        // Predicated region
        $region79: #{quant_moe_block.1} parent=69 // pred_check
          %p528 = pneg %p527
        $region80: #{quant_moe_block.1} parent=69 // pred_check_branch
          %530 = sbr.rel (%p528) target = $region82
        $region81: #{quant_moe_block.1} parent=69 // pred_region
          %v531 = vld [vmem:[%s467] sm:$0xf]
          %v532 = vld [vmem:[%s467 + $0x4] sm:$0xf]
          %v533 = vld [vmem:[%s409] sm:$0xff]
          %v534 = vld [vmem:[%s409 + $0x8] sm:$0xff]
          %v535 = vld [vmem:[%s409 + $0x10] sm:$0xff]
          %v536 = vld [vmem:[%s409 + $0x18] sm:$0xff]
          %v537 = vld [vmem:[%s409 + $0x20] sm:$0xff]
          %v538 = vld [vmem:[%s409 + $0x28] sm:$0xff]
          %v539 = vld [vmem:[%s409 + $0x30] sm:$0xff]
          %v540 = vld [vmem:[%s409 + $0x38] sm:$0xff]
          %v541 = vld [vmem:[%s409 + $0x40] sm:$0xff]
          %v542 = vld [vmem:[%s409 + $0x48] sm:$0xff]
          %v543 = vld [vmem:[%s409 + $0x50] sm:$0xff]
          %v544 = vld [vmem:[%s409 + $0x58] sm:$0xff]
          %v545 = vld [vmem:[%s409 + $0x60] sm:$0xff]
          %v546 = vld [vmem:[%s409 + $0x68] sm:$0xff]
          %v547 = vld [vmem:[%s409 + $0x70] sm:$0xff]
          %v548 = vld [vmem:[%s409 + $0x78] sm:$0xff]
          %v551 = vunpack.c.l.b16 %v531
          %v552 = vunpack.c.l.b16 %v532
          %v553 = vpack.c.b16 %v552, %v551
          %v571 = vunpack.c.l.b16 %v533
          %v572 = vunpack.c.h.b16 %v533
          %v573 = vunpack.c.l.b16 %v534
          %v574 = vunpack.c.h.b16 %v534
          %v575 = vunpack.c.l.b16 %v535
          %v576 = vunpack.c.h.b16 %v535
          %v577 = vunpack.c.l.b16 %v536
          %v578 = vunpack.c.h.b16 %v536
          %v579 = vunpack.c.l.b16 %v537
          %v580 = vunpack.c.h.b16 %v537
          %v581 = vunpack.c.l.b16 %v538
          %v582 = vunpack.c.h.b16 %v538
          %v583 = vunpack.c.l.b16 %v539
          %v584 = vunpack.c.h.b16 %v539
          %v585 = vunpack.c.l.b16 %v540
          %v586 = vunpack.c.h.b16 %v540
          %v587 = vunpack.c.l.b16 %v541
          %v588 = vunpack.c.h.b16 %v541
          %v589 = vunpack.c.l.b16 %v542
          %v590 = vunpack.c.h.b16 %v542
          %v591 = vunpack.c.l.b16 %v543
          %v592 = vunpack.c.h.b16 %v543
          %v593 = vunpack.c.l.b16 %v544
          %v594 = vunpack.c.h.b16 %v544
          %v595 = vunpack.c.l.b16 %v545
          %v596 = vunpack.c.h.b16 %v545
          %v597 = vunpack.c.l.b16 %v546
          %v598 = vunpack.c.h.b16 %v546
          %v599 = vunpack.c.l.b16 %v547
          %v600 = vunpack.c.h.b16 %v547
          %v601 = vunpack.c.l.b16 %v548
          %v602 = vunpack.c.h.b16 %v548
          %v603 = vpack.c.b16 %v573, %v571
          %v604 = vpack.c.b16 %v574, %v572
          %v605 = vpack.c.b16 %v577, %v575
          %v606 = vpack.c.b16 %v578, %v576
          %v607 = vpack.c.b16 %v581, %v579
          %v608 = vpack.c.b16 %v582, %v580
          %v609 = vpack.c.b16 %v585, %v583
          %v610 = vpack.c.b16 %v586, %v584
          %v611 = vpack.c.b16 %v589, %v587
          %v612 = vpack.c.b16 %v590, %v588
          %v613 = vpack.c.b16 %v593, %v591
          %v614 = vpack.c.b16 %v594, %v592
          %v615 = vpack.c.b16 %v597, %v595
          %v616 = vpack.c.b16 %v598, %v596
          %v617 = vpack.c.b16 %v601, %v599
          %v618 = vpack.c.b16 %v602, %v600
          %635 = vmatprep.subr.bf16.mxu0 %v604
          %636 = vmatpush1.bf16.msra.mxu0 %v603
          %637 = vmatprep.subr.bf16.mxu0 %v606
          %638 = vmatpush1.bf16.msra.mxu0 %v605
          %639 = vmatprep.subr.bf16.mxu0 %v608
          %640 = vmatpush1.bf16.msra.mxu0 %v607
          %641 = vmatprep.subr.bf16.mxu0 %v610
          %642 = vmatpush1.bf16.msra.mxu0 %v609
          %643 = vmatprep.subr.bf16.mxu0 %v612
          %644 = vmatpush1.bf16.msra.mxu0 %v611
          %645 = vmatprep.subr.bf16.mxu0 %v614
          %646 = vmatpush1.bf16.msra.mxu0 %v613
          %647 = vmatprep.subr.bf16.mxu0 %v616
          %648 = vmatpush1.bf16.msra.mxu0 %v615
          %649 = vmatprep.subr.bf16.mxu0 %v618
          %650 = vmatpush1.bf16.msra.mxu0 %v617
          %651 = vmatprep.subr.bf16.mxu0 0
          %652 = vmatpush1.bf16.msra.mxu0 0
          %653 = vmatprep.subr.bf16.mxu0 0
          %654 = vmatpush1.bf16.msra.mxu0 0
          %655 = vmatprep.subr.bf16.mxu0 0
          %656 = vmatpush1.bf16.msra.mxu0 0
          %657 = vmatprep.subr.bf16.mxu0 0
          %658 = vmatpush1.bf16.msra.mxu0 0
          %659 = vmatprep.subr.bf16.mxu0 0
          %660 = vmatpush1.bf16.msra.mxu0 0
          %661 = vmatprep.subr.bf16.mxu0 0
          %662 = vmatpush1.bf16.msra.mxu0 0
          %663 = vmatprep.subr.bf16.mxu0 0
          %664 = vmatpush1.bf16.msra.mxu0 0
          %665 = vmatprep.subr.bf16.mxu0 0
          %666 = vmatpush1.bf16.msra.mxu0 0
          %667 = vmatprep.mubr.bf16.mxu0 0
          %668 = vmatmul.mubr.bf16.gmra.mrb[0].mxu0 %v553
          %v669 = vpop.f32.mrb[0].mxu0
          %v670 = vadd.f32 0.0, %v669
          %v671 = vpop.f32.mrb[0].mxu0
          %v672 = vadd.f32 0.0, %v671
          %v673 = vpop.f32.mrb[0].mxu0
          %v674 = vadd.f32 0.0, %v673
          %v675 = vpop.f32.mrb[0].mxu0
          %v676 = vadd.f32 0.0, %v675
          %677 = vdwg.mxu0
          %v678 = vxor.u32 %v670, 2147483648
          %v679 = vxor.u32 %v674, 2147483648
          %v680 = vmul.f32 %v678, 1.442695
          %v681 = vpow.pop %v680
          %v682 = vmul.f32 %v679, 1.442695
          %v683 = vpow.pop %v682
          %v684 = vadd.f32 %v681, 1.0
          %v685 = vadd.f32 %v683, 1.0
          %v686 = vrcp.pop %v684
          %v687 = vmul.f32 1.0, %v686
          %v688 = vrcp.pop %v685
          %v689 = vmul.f32 1.0, %v688
          %v690 = vmul.f32 %v670, %v687
          %v691 = vmul.f32 %v674, %v689
          %v692 = vmul.f32 %v690, %v672
          %v693 = vmul.f32 %v691, %v676
          %v694 = vpack.c.bf16 %v693, %v692
          %v695 = vld [vmem:[%s494] sm:$0xf]
          %v696 = vld [vmem:[%s494 + $0x4] sm:$0xf]
          %v697 = vld [vmem:[%s494 + $0x8] sm:$0xf]
          %v698 = vld [vmem:[%s494 + $0xc] sm:$0xf]
          %v699 = vld [vmem:[%s494 + $0x10] sm:$0xf]
          %v700 = vld [vmem:[%s494 + $0x14] sm:$0xf]
          %v701 = vld [vmem:[%s494 + $0x18] sm:$0xf]
          %v702 = vld [vmem:[%s494 + $0x1c] sm:$0xf]
          %v703 = vld [vmem:[%s494 + $0x20] sm:$0xf]
          %v704 = vld [vmem:[%s494 + $0x24] sm:$0xf]
          %v705 = vld [vmem:[%s494 + $0x28] sm:$0xf]
          %v706 = vld [vmem:[%s494 + $0x2c] sm:$0xf]
          %v707 = vld [vmem:[%s494 + $0x30] sm:$0xf]
          %v708 = vld [vmem:[%s494 + $0x34] sm:$0xf]
          %v709 = vld [vmem:[%s494 + $0x38] sm:$0xf]
          %v710 = vld [vmem:[%s494 + $0x3c] sm:$0xf]
          %v727 = vunpack.c.l.b16 %v695
          %v728 = vunpack.c.l.b16 %v696
          %v729 = vunpack.c.l.b16 %v697
          %v730 = vunpack.c.l.b16 %v698
          %v731 = vunpack.c.l.b16 %v699
          %v732 = vunpack.c.l.b16 %v700
          %v733 = vunpack.c.l.b16 %v701
          %v734 = vunpack.c.l.b16 %v702
          %v735 = vunpack.c.l.b16 %v703
          %v736 = vunpack.c.l.b16 %v704
          %v737 = vunpack.c.l.b16 %v705
          %v738 = vunpack.c.l.b16 %v706
          %v739 = vunpack.c.l.b16 %v707
          %v740 = vunpack.c.l.b16 %v708
          %v741 = vunpack.c.l.b16 %v709
          %v742 = vunpack.c.l.b16 %v710
          %v743 = vpack.c.b16 %v728, %v727
          %v744 = vpack.c.b16 %v730, %v729
          %v745 = vpack.c.b16 %v732, %v731
          %v746 = vpack.c.b16 %v734, %v733
          %v747 = vpack.c.b16 %v736, %v735
          %v748 = vpack.c.b16 %v738, %v737
          %v749 = vpack.c.b16 %v740, %v739
          %v750 = vpack.c.b16 %v742, %v741
          %759 = vmatprep.subr.bf16.mxu0 0
          %760 = vmatpush1.bf16.msra.mxu0 %v743
          %761 = vmatprep.subr.bf16.mxu0 0
          %762 = vmatpush1.bf16.msra.mxu0 %v744
          %763 = vmatprep.subr.bf16.mxu0 0
          %764 = vmatpush1.bf16.msra.mxu0 %v745
          %765 = vmatprep.subr.bf16.mxu0 0
          %766 = vmatpush1.bf16.msra.mxu0 %v746
          %767 = vmatprep.subr.bf16.mxu0 0
          %768 = vmatpush1.bf16.msra.mxu0 %v747
          %769 = vmatprep.subr.bf16.mxu0 0
          %770 = vmatpush1.bf16.msra.mxu0 %v748
          %771 = vmatprep.subr.bf16.mxu0 0
          %772 = vmatpush1.bf16.msra.mxu0 %v749
          %773 = vmatprep.subr.bf16.mxu0 0
          %774 = vmatpush1.bf16.msra.mxu0 %v750
          %775 = vmatprep.subr.bf16.mxu0 0
          %776 = vmatpush1.bf16.msra.mxu0 0
          %777 = vmatprep.subr.bf16.mxu0 0
          %778 = vmatpush1.bf16.msra.mxu0 0
          %779 = vmatprep.subr.bf16.mxu0 0
          %780 = vmatpush1.bf16.msra.mxu0 0
          %781 = vmatprep.subr.bf16.mxu0 0
          %782 = vmatpush1.bf16.msra.mxu0 0
          %783 = vmatprep.subr.bf16.mxu0 0
          %784 = vmatpush1.bf16.msra.mxu0 0
          %785 = vmatprep.subr.bf16.mxu0 0
          %786 = vmatpush1.bf16.msra.mxu0 0
          %787 = vmatprep.subr.bf16.mxu0 0
          %788 = vmatpush1.bf16.msra.mxu0 0
          %789 = vmatprep.subr.bf16.mxu0 0
          %790 = vmatpush1.bf16.msra.mxu0 0
          %791 = vmatprep.mubr.bf16.mxu0 0
          %792 = vmatmul.mubr.bf16.gmra.mrb[0].mxu0 %v694
          %v793 = vpop.f32.mrb[0].mxu0
          %v794 = vadd.f32 0.0, %v793
          %v795 = vpop.f32.mrb[0].mxu0
          %v796 = vpop.f32.mrb[0].mxu0
          %v797 = vadd.f32 0.0, %v796
          %v798 = vpop.f32.mrb[0].mxu0
          %799 = vdwg.mxu0
          %v800 = vld [vmem:[#allocation2] sm:$0xff]
          %v801 = vld [vmem:[#allocation2 + $0x8] sm:$0xff]
          %v802 = vld [vmem:[%s512] sm:$0xff]
          %v803 = vld [vmem:[%s512 + $0x8] sm:$0xff]
          %805 = vset.pattern.permute.xlu0 0
          %806 = vperm.xlu0 %805, %v802
          %v807 = vpop.permute.xlu0 %806
          %810 = vset.pattern.permute.xlu0 0
          %811 = vperm.xlu0 %810, %v803
          %v812 = vpop.permute.xlu0 %811
          %v814 = vmul.f32 %v807, %v794
          %v815 = vmul.f32 %v812, %v797
          %v816 = vadd.f32 %v800, %v814
          %v817 = vadd.f32 %v801, %v815
          %818 = vst [vmem:[#allocation2] sm:$0xff] %v816
          %819 = vst [vmem:[#allocation2 + $0x8] sm:$0xff] %v817
        $region82: #{quant_moe_block.1} parent=69 // pred_fallthru
          _
        %p820 = scmp.eq.s32.totalorder %s41, 16
        %p821 = scmp.eq.s32.totalorder %s42, 1
        %p822 = pnand %p820, %p821
        %p823 = pneg %p822
        // Predicated region
        $region83: #{quant_moe_block.1} parent=69 // pred_check
          _
        $region84: #{quant_moe_block.1} parent=69 // pred_check_branch
          %825 = sbr.rel (%p822) target = $region86
        $region85: #{quant_moe_block.1} parent=69 // pred_region
          %v826 = vld [vmem:[#allocation2] sm:$0xff]
          %v827 = vld [vmem:[#allocation2 + $0x8] sm:$0xff]
          %828 = vst [vmem:[%s462] sm:$0xff] %v826
          %829 = vst [vmem:[%s462 + $0x8] sm:$0xff] %v827
        $region86: #{quant_moe_block.1} parent=69 // pred_fallthru
          _
        %s830 = sand.u32 %s204, 1
        %s831 = scalar_lea.sflag [#allocation9], %s830
        %s832 = sand.u32 %s204, 1
        %s833 = smul.addr %s832, 16
        %s834 = scalar_lea.vmem [#allocation8], %s833
        // Predicated region
        $region87: #{quant_moe_block.1} parent=69 // pred_check
          %p835 = pneg %p214
        $region88: #{quant_moe_block.1} parent=69 // pred_check_branch
          %837 = sbr.rel (%p835) target = $region90
        $region89: #{quant_moe_block.1} parent=69 // pred_region
          %s838 = smul.u32 2, %s40
          %s840 = ssub.s32 256, 256
          %841 = vsyncadd %s831, %s840
          %s842 = smul.addr %s838, 128
          %s843 = scalar_lea.hbm %s7, %s842
          %s844 = sshll.u32 %s834, 4
          %s845 = int_to_ptr.vmem [resolvable:$true] %s844
          %850 = dma.vmem_to_hbm [thread:$0]  %s845, 256, %s843, %s831, 128, 128, 8
        $region90: #{quant_moe_block.1} parent=69 // pred_fallthru
          _
      $region70: #{quant_moe_block.1} parent=5 // pred_fallthru
        _
      %p851 = scmp.le.s32.totalorder 2, %s30
      // Predicated region
      $region91: #{quant_moe_block.1} parent=5 // pred_check
        %p852 = pneg %p851
      $region92: #{quant_moe_block.1} parent=5 // pred_check_branch
        %854 = sbr.rel (%p852) target = $region94
      $region93: #{quant_moe_block.1} parent=5 // pred_region
        %s855 = ssub.s32 %s30, 2
        // Predicated region
        $region95: #{quant_moe_block.1} parent=93 // pred_check
          %p856 = pneg %p220
        $region96: #{quant_moe_block.1} parent=93 // pred_check_branch
          %858 = sbr.rel (%p856) target = $region98
        $region97: #{quant_moe_block.1} parent=93 // pred_region
          %s859 = sand.u32 %s205, 1
          %s860 = scalar_lea.sflag [#allocation9], %s859
          %s861 = sand.u32 %s205, 1
          %s862 = smul.addr %s861, 16
          %s863 = scalar_lea.vmem [#allocation8], %s862
          %864 = dma.done %s860, 256
        $region98: #{quant_moe_block.1} parent=93 // pred_fallthru
          _
      $region94: #{quant_moe_block.1} parent=5 // pred_fallthru
        _
    $region6: #{quant_moe_block.1} parent=1 // loop_footer
      %s34 = sadd.s32 1, %s30
    $region7: #{quant_moe_block.1} parent=1 // loop_footer_branch
      %29 = sbr.rel target = $region3
    $region8: #{quant_moe_block.1} parent=1 // loop_exit
      _
    %865 = vsyncpa [#allocation9], 1
    %s866 = scalar_lea.sflag [#allocation9], 1
    %867 = vsyncpa %s866, 1

</llo_original>
